<compile_context>
chip_gen: v7x
topology: tpu7x:2x2x1
jax: 0.10.0
libtpu: 0.0.40
codegen_flags: <defaults>
</compile_context>

<pallas_src>
import numpy as np
import jax
import jax.numpy as jnp
from jax.experimental import pallas as pl
from jax.experimental.pallas import tpu as pltpu


def _pos_embed_learned_kernel(plane_ref, o_ref):
    """Copies one resident channel-half plane into every batch slice of a block.

    plane_ref: (Cb, HW)     precomputed channel-half plane (resident in VMEM).
    o_ref:     (bb, Cb, HW) lane-dense output block (bb = batches per block).
    """
    for b in range(o_ref.shape[0]):          # bb is small and static: unrolled
        o_ref[b, :, :] = plane_ref[...]


def position_embedding_learned(x, row_weight, col_weight):
    """Pallas implementation of PositionEmbeddingLearned.forward.

    x:          (B, C, H, W) -- only its shape is used (as in the torch module).
    row_weight: (50, F) learned row-embedding table (nn.Embedding weight).
    col_weight: (50, F) learned col-embedding table (nn.Embedding weight).
    Returns:    (B, 2F, H, W) in the tables' dtype.
    """
    B = int(x.shape[0])
    H = int(x.shape[-2])
    W = int(x.shape[-1])
    F = int(row_weight.shape[-1])
    assert H <= row_weight.shape[0] and W <= col_weight.shape[0], \
        "spatial extent exceeds the 50-entry embedding tables"

    out_dtype = jnp.result_type(row_weight.dtype, col_weight.dtype)
    itemsize = jnp.dtype(out_dtype).itemsize
    HW = H * W

    # The nn.Embedding gathers use arange(H)/arange(W) indices, i.e. plain
    # slices.  Build the two channel-major (F, H*W) planes once in the wrapper
    # (tables are <= ~51 KB, planes <= ~2.6 MB) so the kernel is a pure copy:
    #   plane_x[c, h*W + w] = col_embed[w, c]
    #   plane_y[c, h*W + w] = row_embed[h, c]
    colT = col_weight[:W].T.astype(out_dtype)          # (F, W)
    rowT = row_weight[:H].T.astype(out_dtype)          # (F, H)
    plane_x = jnp.tile(colT, (1, H))                   # (F, HW): index % W -> w
    plane_y = jnp.repeat(rowT, W, axis=1)              # (F, HW): index // W -> h

    # Split channels into two halves (two grid steps -> both v7x cores busy)
    # when F is sublane-aligned; otherwise use one full-channel plane.
    if F % 8 == 0:
        planes = jnp.stack([plane_x, plane_y], axis=0)           # (2,  F, HW)
        n_halves, Cb = 2, F
    else:
        planes = jnp.concatenate([plane_x, plane_y], axis=0)[None]  # (1, 2F, HW)
        n_halves, Cb = 1, 2 * F

    plane_bytes = Cb * HW * itemsize
    vmem_limit = 32 << 20   # safe on v5e (128 MiB), v6e (128 MiB), v7x (64 MiB)
    # Fold the whole batch into one output block when double-buffered
    # input + output stays well under the VMEM budget.
    fold_batch = 2 * (B + 1) * plane_bytes <= (24 << 20)

    if fold_batch:
        grid = (n_halves,)
        in_spec = pl.BlockSpec((None, Cb, HW), lambda hi: (hi, 0, 0))
        out_spec = pl.BlockSpec((B, Cb, HW), lambda hi: (0, hi, 0))
        dims = ("parallel",) * 1
    else:
        # channel-half axis outermost so the resident input plane changes only
        # n_halves times; batch innermost.
        grid = (n_halves, B)
        in_spec = pl.BlockSpec((None, Cb, HW), lambda hi, b: (hi, 0, 0))
        out_spec = pl.BlockSpec((1, Cb, HW), lambda hi, b: (b, hi, 0))
        dims = ("parallel", "parallel")

    out_bytes = B * n_halves * plane_bytes
    in_bytes = n_halves * plane_bytes
    cost = pl.CostEstimate(flops=0, transcendentals=0,
                           bytes_accessed=out_bytes + in_bytes)

    out_flat = pl.pallas_call(
        _pos_embed_learned_kernel,
        out_shape=jax.ShapeDtypeStruct((B, 2 * F, HW), out_dtype),
        grid=grid,
        in_specs=[in_spec],
        out_specs=out_spec,
        compiler_params=pltpu.CompilerParams(
            dimension_semantics=dims,
            vmem_limit_bytes=vmem_limit),
        cost_estimate=cost,
    )(planes)

    # NCHW is row-major contiguous over (H, W) -> this reshape is pure metadata.
    return out_flat.reshape(B, 2 * F, H, W)


def _reference_position_embedding_learned(x, row_weight, col_weight):
    """Pure-JAX transliteration of the PyTorch forward (for verification)."""
    B = x.shape[0]
    H, W = int(x.shape[-2]), int(x.shape[-1])
    i = jnp.arange(W)
    j = jnp.arange(H)
    x_emb = col_weight[i]                       # (W, F)
    y_emb = row_weight[j]                       # (H, F)
    F = x_emb.shape[-1]
    pos = jnp.concatenate([
        jnp.broadcast_to(x_emb[None, :, :], (H, W, F)),
        jnp.broadcast_to(y_emb[:, None, :], (H, W, F)),
    ], axis=-1)                                  # (H, W, 2F)
    pos = jnp.transpose(pos, (2, 0, 1))[None]    # (1, 2F, H, W)
    return jnp.broadcast_to(pos, (B, 2 * F, H, W))


if __name__ == "__main__":
    key = jax.random.PRNGKey(0)
    kx, kr, kc = jax.random.split(key, 3)

    B, C, H, W = 2, 4, 16, 16
    num_pos_feats = 64

    # The module only uses the SHAPE of x; its values are irrelevant.
    x = jax.random.normal(kx, (B, C, H, W), dtype=jnp.float32)
    # nn.init.uniform_ -> U[0, 1) learned tables of shape (50, F).
    row_weight = jax.random.uniform(kr, (50, num_pos_feats), dtype=jnp.float32)
    col_weight = jax.random.uniform(kc, (50, num_pos_feats), dtype=jnp.float32)

    out = jax.block_until_ready(
        position_embedding_learned(x, row_weight, col_weight))
    ref = jax.block_until_ready(
        _reference_position_embedding_learned(x, row_weight, col_weight))

    assert out.shape == (B, 2 * num_pos_feats, H, W), out.shape
    assert out.dtype == jnp.float32, out.dtype
    np.testing.assert_allclose(np.asarray(out), np.asarray(ref),
                               rtol=1e-6, atol=1e-6)
    print("KERNEL_OK")
</pallas_src>

<mosaic_0001>
module attributes {stable_mosaic.version = 11 : i64} {
  func.func @_pos_embed_learned_kernel(%arg0: i32, %arg1: memref<1x64x256xf32, #tpu.memory_space<vmem>>, %arg2: memref<2x64x256xf32, #tpu.memory_space<vmem>>) attributes {dimension_semantics = [#tpu.dimension_semantics<parallel>], iteration_bounds = array<i64: 2>, scalar_prefetch = 0 : i64, scratch_operands = 0 : i64, tpu.core_type = #tpu.core_type<tc>, window_params = [{transform_indices = @transform_0, window_bounds = array<i64: 1, 64, 256>}, {transform_indices = @transform_1, window_bounds = array<i64: 2, 64, 256>}]} {
    %c0 = arith.constant 0 : index
    %c0_0 = arith.constant 0 : index
    %c0_1 = arith.constant 0 : index
    %0 = vector.load %arg1[%c0, %c0_0, %c0_1] : memref<1x64x256xf32, #tpu.memory_space<vmem>>, vector<1x64x256xf32>
    %1 = vector.shape_cast %0 : vector<1x64x256xf32> to vector<64x256xf32>
    %c0_2 = arith.constant 0 : index
    %c0_3 = arith.constant 0 : index
    %c0_4 = arith.constant 0 : index
    %2 = vector.load %arg2[%c0_2, %c0_3, %c0_4] : memref<2x64x256xf32, #tpu.memory_space<vmem>>, vector<1x64x256xf32>
    %3 = vector.shape_cast %2 : vector<1x64x256xf32> to vector<64x256xf32>
    %4 = vector.shape_cast %1 : vector<64x256xf32> to vector<1x64x256xf32>
    tpu.vector_store %arg2[%c0_2, %c0_3, %c0_4], %4 {strides = array<i32>} : memref<2x64x256xf32, #tpu.memory_space<vmem>>, vector<1x64x256xf32>,
    %c0_5 = arith.constant 0 : index
    %c0_6 = arith.constant 0 : index
    %c0_7 = arith.constant 0 : index
    %5 = vector.load %arg1[%c0_5, %c0_6, %c0_7] : memref<1x64x256xf32, #tpu.memory_space<vmem>>, vector<1x64x256xf32>
    %6 = vector.shape_cast %5 : vector<1x64x256xf32> to vector<64x256xf32>
    %c1 = arith.constant 1 : index
    %c0_8 = arith.constant 0 : index
    %c0_9 = arith.constant 0 : index
    %7 = vector.load %arg2[%c1, %c0_8, %c0_9] : memref<2x64x256xf32, #tpu.memory_space<vmem>>, vector<1x64x256xf32>
    %8 = vector.shape_cast %7 : vector<1x64x256xf32> to vector<64x256xf32>
    %9 = vector.shape_cast %6 : vector<64x256xf32> to vector<1x64x256xf32>
    tpu.vector_store %arg2[%c1, %c0_8, %c0_9], %9 {strides = array<i32>} : memref<2x64x256xf32, #tpu.memory_space<vmem>>, vector<1x64x256xf32>,
    return
  }
  func.func @transform_0(%arg0: i32) -> (i32, i32, i32) {
    %c0_i32 = arith.constant 0 : i32
    %c0_i32_0 = arith.constant 0 : i32
    %c0_i32_1 = arith.constant 0 : i32
    return %arg0, %c0_i32, %c0_i32_0 : i32, i32, i32
  }
  func.func @transform_1(%arg0: i32) -> (i32, i32, i32) {
    %c0_i32 = arith.constant 0 : i32
    %c0_i32_0 = arith.constant 0 : i32
    %c0_i32_1 = arith.constant 0 : i32
    return %c0_i32, %arg0, %c0_i32_0 : i32, i32, i32
  }
}

</mosaic_0001>

<llo_original>
// kernel: tpu_custom_call.1
$region0: #{tpu_custom_call.1}
  #allocation0 [shape = 'u32[]', space=smem, size = 0x4, offset = 0x4, fixed_abs, tag = 'smem constant byte address 0x4 - core index']
  #allocation1 [shape = 'u32[144,128]{1,0:T(1,128)}', space=vmem, size = 0x12000, scoped, tag = 'internal scratch']
  #allocation6 [shape = 's32[]', space=sflag, size = 0x4, offset = 0, fixed_abs, tag = 'sflag constant byte address 0x0 - dummy sync flag']
  %s0 = inlined_call_operand.hbm [shape: f32[2,64,256], index: 0, kind: input, shape index: {}]
  %s1 = inlined_call_operand.hbm [shape: f32[2,128,256], index: 1, kind: output, shape index: {}]
  %s2 = sld [smem:[#allocation0]]
  $region41: #{tpu_custom_call.1} parent=0
    _
  %s4 = ssub.s32 1, %s2
  %s5 = scalar_select 0, %s4, %s2
  $region1: #{tpu_custom_call.1} parent=0
    #allocation2 [shape = 'u8[131072]{0}', space=vmem, size = 0x20000, scoped, tag = 'input window, operand 0']
    #allocation3 [shape = 's32[2]{0}', space=sflag, size = 0x8, scoped, tag = 'scoped memory for tpu_custom_call.1']
    #allocation4 [shape = 's32[2]{0}', space=sflag, size = 0x8, scoped, tag = 'scoped memory for tpu_custom_call.1']
    #allocation5 [shape = 'u8[262144]{0}', space=vmem, size = 0x40000, scoped, tag = 'output window, operand 0']
    %6 = vsyncpa [#allocation3], 0
    %s7 = scalar_lea.sflag [#allocation3], 1
    %8 = vsyncpa %s7, 0
    %9 = vsyncpa [#allocation4], 0
    %s10 = scalar_lea.sflag [#allocation4], 1
    %11 = vsyncpa %s10, 0
    loop: start=0, step=1, limit=4
    $region2: #{tpu_custom_call.1} parent=1 // loop_pre_header
      _
    $region3: #{tpu_custom_call.1} parent=1 // loop_header
      %s13 = sphi 0, %s17
      %p14 = scmp.ge.s32.totalorder %s13, 4
      %s23 = sphi 0, %s25
      %s26 = sphi 0, %s23
      %s27 = sphi 0, %s26
      %s43 = sphi 0, %s27
      %s49 = sphi 0, %s51
      %s52 = sphi 0, %s49
      %s53 = sphi 0, %s52
      %s69 = sphi 0, %s53
    $region4: #{tpu_custom_call.1} parent=1 // loop_header_branch
      %16 = sbr.rel (%p14) target = $region8
    $region5: #{tpu_custom_call.1} parent=1 // loop_body
      %s18 = ssub.s32 %s13, 1
      %s19 = ssub.s32 %s13, 2
      %s20 = sadd.s32 %s13, 1
      %s21 = ssub.s32 %s13, %s20
      %p22 = scmp.eq.s32.totalorder %s21, 0
      %s24 = sadd.s32 %s23, 1
      %s25 = scalar_select %p22, %s23, %s24
      %p28 = pneg %p22
      %p29 = scmp.eq.s32.totalorder %s13, 1
      %p30 = por %p28, %p29
      %p31 = scmp.ne.s32.totalorder %s23, %s26
      %p32 = scmp.eq.s32.totalorder %s13, 0
      %p33 = por %p31, %p32
      %p34 = scmp.ne.s32.totalorder %s23, %s26
      %p35 = scmp.eq.s32.totalorder %s18, 1
      %p36 = por %p34, %p35
      %p37 = scmp.ne.s32.totalorder %s26, %s27
      %p38 = scmp.eq.s32.totalorder %s18, 0
      %p39 = por %p37, %p38
      %p40 = scmp.ne.s32.totalorder %s26, %s27
      %p41 = scmp.eq.s32.totalorder %s19, 1
      %p42 = por %p40, %p41
      %p44 = scmp.ne.s32.totalorder %s27, %s43
      %p45 = scmp.eq.s32.totalorder %s19, 0
      %p46 = por %p44, %p45
      %s47 = ssub.s32 %s13, %s20
      %p48 = scmp.eq.s32.totalorder %s47, 0
      %s50 = sadd.s32 %s49, 1
      %s51 = scalar_select %p48, %s49, %s50
      %p54 = pneg %p48
      %p55 = scmp.eq.s32.totalorder %s13, 1
      %p56 = por %p54, %p55
      %p57 = scmp.ne.s32.totalorder %s49, %s52
      %p58 = scmp.eq.s32.totalorder %s13, 0
      %p59 = por %p57, %p58
      %p60 = scmp.ne.s32.totalorder %s49, %s52
      %p61 = scmp.eq.s32.totalorder %s18, 1
      %p62 = por %p60, %p61
      %p63 = scmp.ne.s32.totalorder %s52, %s53
      %p64 = scmp.eq.s32.totalorder %s18, 0
      %p65 = por %p63, %p64
      %p66 = scmp.ne.s32.totalorder %s52, %s53
      %p67 = scmp.eq.s32.totalorder %s19, 1
      %p68 = por %p66, %p67
      %p70 = scmp.ne.s32.totalorder %s53, %s69
      %p71 = scmp.eq.s32.totalorder %s19, 0
      %p72 = por %p70, %p71
      %p73 = scmp.le.s32.totalorder 1, %s13
      %p74 = scmp.lt.s32.totalorder %s13, 3
      %p75 = pnand %p73, %p74
      %p76 = pneg %p75
      // Predicated region
      $region9: #{tpu_custom_call.1} parent=5 // pred_check
        _
      $region10: #{tpu_custom_call.1} parent=5 // pred_check_branch
        %78 = sbr.rel (%p75) target = $region12
      $region11: #{tpu_custom_call.1} parent=5 // pred_region
        %s79 = ssub.s32 %s13, 1
      $region12: #{tpu_custom_call.1} parent=5 // pred_fallthru
        _
      %p80 = scmp.lt.s32.totalorder %s13, 2
      // Predicated region
      $region13: #{tpu_custom_call.1} parent=5 // pred_check
        %p81 = pneg %p80
      $region14: #{tpu_custom_call.1} parent=5 // pred_check_branch
        %83 = sbr.rel (%p81) target = $region16
      $region15: #{tpu_custom_call.1} parent=5 // pred_region
        // Predicated region
        $region17: #{tpu_custom_call.1} parent=15 // pred_check
          %p84 = pneg %p33
        $region18: #{tpu_custom_call.1} parent=15 // pred_check_branch
          %86 = sbr.rel (%p84) target = $region20
        $region19: #{tpu_custom_call.1} parent=15 // pred_region
          %s87 = sand.u32 %s23, 1
          %s88 = scalar_lea.sflag [#allocation3], %s87
          %s89 = sand.u32 %s23, 1
          %s90 = smul.addr %s89, 128
          %s91 = scalar_lea.vmem [#allocation2], %s90
          %s93 = ssub.s32 2048, 2048
          %94 = vsyncadd %s88, %s93
          %s95 = smul.addr %s13, 16
          %s96 = smul.addr %s95, 128
          %s97 = scalar_lea.hbm %s0, %s96
          %s98 = sshll.u32 %s91, 4
          %s99 = int_to_ptr.vmem [resolvable:$true] %s98
          %104 = dma.hbm_to_vmem [thread:$0]  %s97, 2048, %s99, %s88, 256, 256, 16
        $region20: #{tpu_custom_call.1} parent=15 // pred_fallthru
          _
      $region16: #{tpu_custom_call.1} parent=5 // pred_fallthru
        _
      %p105 = scmp.le.s32.totalorder 1, %s13
      %p106 = scmp.lt.s32.totalorder %s13, 3
      %p107 = pnand %p105, %p106
      %p108 = pneg %p107
      // Predicated region
      $region21: #{tpu_custom_call.1} parent=5 // pred_check
        _
      $region22: #{tpu_custom_call.1} parent=5 // pred_check_branch
        %110 = sbr.rel (%p107) target = $region24
      $region23: #{tpu_custom_call.1} parent=5 // pred_region
        %s111 = ssub.s32 %s13, 1
        %s112 = sand.u32 %s26, 1
        %s113 = scalar_lea.sflag [#allocation3], %s112
        %s114 = sand.u32 %s26, 1
        %s115 = smul.addr %s114, 128
        %s116 = scalar_lea.vmem [#allocation2], %s115
        // Predicated region
        $region25: #{tpu_custom_call.1} parent=23 // pred_check
          %p117 = pneg %p39
        $region26: #{tpu_custom_call.1} parent=23 // pred_check_branch
          %119 = sbr.rel (%p117) target = $region28
        $region27: #{tpu_custom_call.1} parent=23 // pred_region
          %120 = dma.done %s113, 2048
        $region28: #{tpu_custom_call.1} parent=23 // pred_fallthru
          _
        %s121 = sand.u32 %s26, 1
        %s122 = scalar_lea.sflag [#allocation3], %s121
        %s123 = sand.u32 %s26, 1
        %s124 = smul.addr %s123, 128
        %s125 = scalar_lea.vmem [#allocation2], %s124
        %p126 = pneg %p39
        %p127 = pneg %p36
        %p128 = pneg %p65
        %p129 = pneg %p62
        %s130 = sand.u32 %s52, 1
        %s131 = scalar_lea.sflag [#allocation4], %s130
        %s132 = sand.u32 %s52, 1
        %s133 = smul.addr %s132, 256
        %s134 = scalar_lea.vmem [#allocation5], %s133
        %s135 = smul.u32 8, %s18
        %v136 = vld [vmem:[%s116] sm:$0xff]
        %v137 = vld [vmem:[%s116 + $0x8] sm:$0xff]
        %v138 = vld [vmem:[%s116 + $0x10] sm:$0xff]
        %v139 = vld [vmem:[%s116 + $0x18] sm:$0xff]
        %v140 = vld [vmem:[%s116 + $0x20] sm:$0xff]
        %v141 = vld [vmem:[%s116 + $0x28] sm:$0xff]
        %v142 = vld [vmem:[%s116 + $0x30] sm:$0xff]
        %v143 = vld [vmem:[%s116 + $0x38] sm:$0xff]
        %v144 = vld [vmem:[%s116 + $0x40] sm:$0xff]
        %v145 = vld [vmem:[%s116 + $0x48] sm:$0xff]
        %v146 = vld [vmem:[%s116 + $0x50] sm:$0xff]
        %v147 = vld [vmem:[%s116 + $0x58] sm:$0xff]
        %v148 = vld [vmem:[%s116 + $0x60] sm:$0xff]
        %v149 = vld [vmem:[%s116 + $0x68] sm:$0xff]
        %v150 = vld [vmem:[%s116 + $0x70] sm:$0xff]
        %v151 = vld [vmem:[%s116 + $0x78] sm:$0xff]
        %152 = vst [vmem:[%s134] sm:$0xff] %v136
        %153 = vst [vmem:[%s134 + $0x8] sm:$0xff] %v137
        %154 = vst [vmem:[%s134 + $0x10] sm:$0xff] %v138
        %155 = vst [vmem:[%s134 + $0x18] sm:$0xff] %v139
        %156 = vst [vmem:[%s134 + $0x20] sm:$0xff] %v140
        %157 = vst [vmem:[%s134 + $0x28] sm:$0xff] %v141
        %158 = vst [vmem:[%s134 + $0x30] sm:$0xff] %v142
        %159 = vst [vmem:[%s134 + $0x38] sm:$0xff] %v143
        %160 = vst [vmem:[%s134 + $0x40] sm:$0xff] %v144
        %161 = vst [vmem:[%s134 + $0x48] sm:$0xff] %v145
        %162 = vst [vmem:[%s134 + $0x50] sm:$0xff] %v146
        %163 = vst [vmem:[%s134 + $0x58] sm:$0xff] %v147
        %164 = vst [vmem:[%s134 + $0x60] sm:$0xff] %v148
        %165 = vst [vmem:[%s134 + $0x68] sm:$0xff] %v149
        %166 = vst [vmem:[%s134 + $0x70] sm:$0xff] %v150
        %167 = vst [vmem:[%s134 + $0x78] sm:$0xff] %v151
        %v168 = vld [vmem:[%s116] sm:$0xff]
        %v169 = vld [vmem:[%s116 + $0x8] sm:$0xff]
        %v170 = vld [vmem:[%s116 + $0x10] sm:$0xff]
        %v171 = vld [vmem:[%s116 + $0x18] sm:$0xff]
        %v172 = vld [vmem:[%s116 + $0x20] sm:$0xff]
        %v173 = vld [vmem:[%s116 + $0x28] sm:$0xff]
        %v174 = vld [vmem:[%s116 + $0x30] sm:$0xff]
        %v175 = vld [vmem:[%s116 + $0x38] sm:$0xff]
        %v176 = vld [vmem:[%s116 + $0x40] sm:$0xff]
        %v177 = vld [vmem:[%s116 + $0x48] sm:$0xff]
        %v178 = vld [vmem:[%s116 + $0x50] sm:$0xff]
        %v179 = vld [vmem:[%s116 + $0x58] sm:$0xff]
        %v180 = vld [vmem:[%s116 + $0x60] sm:$0xff]
        %v181 = vld [vmem:[%s116 + $0x68] sm:$0xff]
        %v182 = vld [vmem:[%s116 + $0x70] sm:$0xff]
        %v183 = vld [vmem:[%s116 + $0x78] sm:$0xff]
        %s184 = scalar_lea.vmem %s134, 128 [#allocation5]
        %185 = vst [vmem:[%s184] sm:$0xff] %v168
        %186 = vst [vmem:[%s184 + $0x8] sm:$0xff] %v169
        %187 = vst [vmem:[%s184 + $0x10] sm:$0xff] %v170
        %188 = vst [vmem:[%s184 + $0x18] sm:$0xff] %v171
        %189 = vst [vmem:[%s184 + $0x20] sm:$0xff] %v172
        %190 = vst [vmem:[%s184 + $0x28] sm:$0xff] %v173
        %191 = vst [vmem:[%s184 + $0x30] sm:$0xff] %v174
        %192 = vst [vmem:[%s184 + $0x38] sm:$0xff] %v175
        %193 = vst [vmem:[%s184 + $0x40] sm:$0xff] %v176
        %194 = vst [vmem:[%s184 + $0x48] sm:$0xff] %v177
        %195 = vst [vmem:[%s184 + $0x50] sm:$0xff] %v178
        %196 = vst [vmem:[%s184 + $0x58] sm:$0xff] %v179
        %197 = vst [vmem:[%s184 + $0x60] sm:$0xff] %v180
        %198 = vst [vmem:[%s184 + $0x68] sm:$0xff] %v181
        %199 = vst [vmem:[%s184 + $0x70] sm:$0xff] %v182
        %200 = vst [vmem:[%s184 + $0x78] sm:$0xff] %v183
        %s201 = sand.u32 %s52, 1
        %s202 = scalar_lea.sflag [#allocation4], %s201
        %s203 = sand.u32 %s52, 1
        %s204 = smul.addr %s203, 256
        %s205 = scalar_lea.vmem [#allocation5], %s204
        // Predicated region
        $region29: #{tpu_custom_call.1} parent=23 // pred_check
          %p206 = pneg %p62
        $region30: #{tpu_custom_call.1} parent=23 // pred_check_branch
          %208 = sbr.rel (%p206) target = $region32
        $region31: #{tpu_custom_call.1} parent=23 // pred_region
          #allocation7 [shape = 'u32[6]{0}', space=smem, size = 0x18, scoped, tag = 'DMA stride descriptor']
          %s209 = smul.u32 8, %s18
          %s211 = ssub.s32 4096, 4096
          %212 = vsyncadd %s202, %s211
          %s213 = smul.addr %s209, 2
          %s214 = smul.addr %s213, 128
          %s215 = scalar_lea.hbm %s1, %s214
          %s217 = sshll.u32 1, 14
          %s218 = sxor.u32 4294967295, %s217
          %s221 = sshll.u32 7, 18
          %s222 = sxor.u32 4294967295, %s221
          %s223 = sand.u32 0, %s222
          %s225 = sor.u32 %s223, 0
          %s227 = sshll.u32 3, 24
          %s228 = sxor.u32 4294967295, %s227
          %s229 = sand.u32 %s225, %s228
          %s231 = sor.u32 %s229, 0
          %s232 = sshll.u32 %s205, 4
          %s233 = int_to_ptr.vmem [resolvable:$true] %s232
          %239 = sst [smem:[#allocation7]] 2048
          %s240 = scalar_lea.smem [#allocation7], 1
          %241 = sst [smem:[%s240]] 4096
          %s242 = scalar_lea.smem [#allocation7], 2
          %243 = sst [smem:[%s242]] 8
          %s244 = scalar_lea.smem [#allocation7], 3
          %245 = sst [smem:[%s244]] 256
          %s246 = scalar_lea.smem [#allocation7], 4
          %247 = sst [smem:[%s246]] 256
          %s248 = scalar_lea.smem [#allocation7], 5
          %249 = sst [smem:[%s248]] 16
          %251 = dma.general %s233, 4096, %s215, %s202, [#allocation6], [#allocation7], %s231, 0
        $region32: #{tpu_custom_call.1} parent=23 // pred_fallthru
          _
      $region24: #{tpu_custom_call.1} parent=5 // pred_fallthru
        _
      %p252 = scmp.le.s32.totalorder 2, %s13
      // Predicated region
      $region33: #{tpu_custom_call.1} parent=5 // pred_check
        %p253 = pneg %p252
      $region34: #{tpu_custom_call.1} parent=5 // pred_check_branch
        %255 = sbr.rel (%p253) target = $region36
      $region35: #{tpu_custom_call.1} parent=5 // pred_region
        %s256 = ssub.s32 %s13, 2
        // Predicated region
        $region37: #{tpu_custom_call.1} parent=35 // pred_check
          %p257 = pneg %p68
        $region38: #{tpu_custom_call.1} parent=35 // pred_check_branch
          %259 = sbr.rel (%p257) target = $region40
        $region39: #{tpu_custom_call.1} parent=35 // pred_region
          %s260 = sand.u32 %s53, 1
          %s261 = scalar_lea.sflag [#allocation4], %s260
          %s262 = sand.u32 %s53, 1
          %s263 = smul.addr %s262, 256
          %s264 = scalar_lea.vmem [#allocation5], %s263
          %265 = dma.done %s261, 4096
        $region40: #{tpu_custom_call.1} parent=35 // pred_fallthru
          _
      $region36: #{tpu_custom_call.1} parent=5 // pred_fallthru
        _
    $region6: #{tpu_custom_call.1} parent=1 // loop_footer
      %s17 = sadd.s32 1, %s13
    $region7: #{tpu_custom_call.1} parent=1 // loop_footer_branch
      %12 = sbr.rel target = $region3
    $region8: #{tpu_custom_call.1} parent=1 // loop_exit
      _
    %266 = vsyncpa [#allocation3], 1
    %s267 = scalar_lea.sflag [#allocation3], 1
    %268 = vsyncpa %s267, 1
    %269 = vsyncpa [#allocation4], 1
    %s270 = scalar_lea.sflag [#allocation4], 1
    %271 = vsyncpa %s270, 1

</llo_original>
